<compile_context>
chip_gen: v7x
topology: tpu7x:2x2x1
jax: 0.10.0
libtpu: 0.0.40
codegen_flags: <defaults>
</compile_context>

<pallas_src>
import functools

import jax
import jax.numpy as jnp
from jax.experimental import pallas as pl
from jax.experimental.pallas import tpu as pltpu


def _lstm_serial_kernel(*refs, num_layers, hidden):
    """Serial recurrent chain; one grid step per layer.

    refs (L > 1):  gates_pre (1,B,4H) f32, w_ih (1,H,4H) bf16, c0 (1,B,H) f32,
                   new_h (1,B,H) f32, new_c (1,B,H) f32, h_sc (B,H) bf16
    refs (L == 1): gates_pre, c0, new_h, new_c, h_sc
    """
    if num_layers > 1:
        gpre_ref, wih_ref, c0_ref, new_h_ref, new_c_ref, h_sc = refs
    else:
        gpre_ref, c0_ref, new_h_ref, new_c_ref, h_sc = refs
        wih_ref = None

    H = hidden
    l = pl.program_id(0)

    def cell(gates, c_prev):
        i = jax.nn.sigmoid(gates[:, 0 * H:1 * H])
        f = jax.nn.sigmoid(gates[:, 1 * H:2 * H])
        g = jnp.tanh(gates[:, 2 * H:3 * H])
        o = jax.nn.sigmoid(gates[:, 3 * H:4 * H])
        c_new = f * c_prev + i * g
        h_new = o * jnp.tanh(c_new)
        return h_new, c_new

    def write(h_new, c_new):
        new_h_ref[0] = h_new
        new_c_ref[0] = c_new
        h_sc[...] = h_new.astype(jnp.bfloat16)   # carried to the next layer

    # Layer 0: gate pre-activation is fully precomputed (x and h0[0] are both
    # state-independent) -> no matmul on the chain at all.
    @pl.when(l == 0)
    def _():
        h_new, c_new = cell(gpre_ref[0], c0_ref[0])
        write(h_new, c_new)

    if num_layers > 1:
        # Layers 1..L-1: only the input-side half (K = H) is on the serial
        # chain; the recurrent half + bias is already inside gates_pre.
        @pl.when(l > 0)
        def _():
            gates = gpre_ref[0] + jnp.dot(
                h_sc[...], wih_ref[0], preferred_element_type=jnp.float32)
            h_new, c_new = cell(gates, c0_ref[0])
            write(h_new, c_new)


def _round_up(x, m):
    return (x + m - 1) // m * m


def _vmem_limit_bytes(B, H, has_wih):
    """Scoped-VMEM request: padded resident blocks x2 double-buffer + headroom."""
    Bs = _round_up(B, 8)                       # f32 sublane tile
    Hl = _round_up(H, 128)
    G = _round_up(4 * H, 128)
    n = 2 * Bs * G * 4                         # gates_pre blocks
    if has_wih:
        n += 2 * _round_up(H, 16) * G * 2      # w_ih blocks (bf16)
    n += 2 * Bs * Hl * 4                       # c0 blocks
    n += 2 * 2 * Bs * Hl * 4                   # new_h / new_c blocks
    n += _round_up(B, 16) * Hl * 2             # h scratch (bf16)
    return int(min(max(2 * n, 4 << 20), 96 << 20))


def multilayer_lstm_cells(x, h0, c0, w_ih_list, w_hh_list, b_ih_list, b_hh_list):
    """Eval-mode forward of MultiLayerLSTMCells_abs_dec.

    x:  (B, input_size)
    h0: (L, B, H), c0: (L, B, H)
    w_ih_list[l]: (4H, input_size if l==0 else H)   (PyTorch layout)
    w_hh_list[l]: (4H, H)
    b_*_list[l]:  (4H,)
    Returns new_h (L, B, H), new_c (L, B, H), both float32.
    """
    L, B, H = h0.shape

    # ---- Off-critical-path precompute (review item 1): one batched bf16 matmul
    #      with f32 accumulation; combined bias folded in (review item 12).
    whh_T = jnp.stack([jnp.asarray(w).T for w in w_hh_list]).astype(jnp.bfloat16)  # (L, H, 4H)
    bias = jnp.stack([
        (jnp.asarray(b_ih_list[l]) + jnp.asarray(b_hh_list[l])).astype(jnp.float32)
        for l in range(L)])                                                         # (L, 4H)

    gates_pre = jnp.einsum('lbh,lhg->lbg', h0.astype(jnp.bfloat16), whh_T,
                           preferred_element_type=jnp.float32)                      # (L, B, 4H)
    gates_pre = gates_pre + bias[:, None, :]
    # Layer 0's input-side half is also state independent -> precompute it too.
    g0_x = jnp.dot(x.astype(jnp.bfloat16),
                   jnp.asarray(w_ih_list[0]).T.astype(jnp.bfloat16),
                   preferred_element_type=jnp.float32)                              # (B, 4H)
    gates_pre = gates_pre.at[0].add(g0_x)

    c0_f = c0.astype(jnp.float32)

    # ---- Serial-chain inputs: only W_ih^T of layers 1..L-1, streamed per layer.
    in_specs = [pl.BlockSpec((1, B, 4 * H), lambda l: (l, 0, 0))]   # gates_pre[l]
    args = [gates_pre]
    if L > 1:
        wih_T = jnp.stack([jnp.asarray(w_ih_list[l]).T for l in range(1, L)]
                          ).astype(jnp.bfloat16)                    # (L-1, H, 4H)
        # Block index max(l-1, 0): layer l's weight is DMA'd during step l-1
        # (double-buffered); step 0 and step 1 share the same block index, so
        # there is no dummy weight and no redundant fetch.
        in_specs.append(
            pl.BlockSpec((1, H, 4 * H), lambda l: (jnp.maximum(l - 1, 0), 0, 0)))
        args.append(wih_T)
    in_specs.append(pl.BlockSpec((1, B, H), lambda l: (l, 0, 0)))   # c0[l]
    args.append(c0_f)

    kernel = functools.partial(_lstm_serial_kernel, num_layers=L, hidden=H)

    new_h, new_c = pl.pallas_call(
        kernel,
        out_shape=(jax.ShapeDtypeStruct((L, B, H), jnp.float32),
                   jax.ShapeDtypeStruct((L, B, H), jnp.float32)),
        grid_spec=pltpu.PrefetchScalarGridSpec(
            num_scalar_prefetch=0,
            grid=(L,),                                   # one step per layer
            in_specs=in_specs,
            out_specs=(pl.BlockSpec((1, B, H), lambda l: (l, 0, 0)),
                       pl.BlockSpec((1, B, H), lambda l: (l, 0, 0))),
            scratch_shapes=[pltpu.VMEM((B, H), jnp.bfloat16)],   # h carried across layers
        ),
        compiler_params=pltpu.CompilerParams(
            dimension_semantics=("arbitrary",),          # layers are a dependent chain
            vmem_limit_bytes=_vmem_limit_bytes(B, H, L > 1)),
    )(*args)
    return new_h, new_c


def _reference(x, h0, c0, w_ih_list, w_hh_list, b_ih_list, b_hh_list):
    """Pure-JAX reference mirroring the kernel numerics.

    Matmul inputs bf16, f32 accumulation, gate math and c/h state in f32.
    Semantics == eval-mode torch.nn.LSTMCell stack (gate order [i, f, g, o]).
    """
    L, _, H = h0.shape
    hs, cs = [], []
    inp = x.astype(jnp.float32)
    for l in range(L):
        wih = jnp.asarray(w_ih_list[l]).T.astype(jnp.bfloat16)
        whh = jnp.asarray(w_hh_list[l]).T.astype(jnp.bfloat16)
        gates = (jnp.dot(inp.astype(jnp.bfloat16), wih,
                         preferred_element_type=jnp.float32)
                 + jnp.dot(h0[l].astype(jnp.bfloat16), whh,
                           preferred_element_type=jnp.float32)
                 + (b_ih_list[l] + b_hh_list[l]).astype(jnp.float32))
        i = jax.nn.sigmoid(gates[:, 0 * H:1 * H])
        f = jax.nn.sigmoid(gates[:, 1 * H:2 * H])
        g = jnp.tanh(gates[:, 2 * H:3 * H])
        o = jax.nn.sigmoid(gates[:, 3 * H:4 * H])
        c = f * c0[l].astype(jnp.float32) + i * g
        h = o * jnp.tanh(c)
        hs.append(h)
        cs.append(c)
        inp = h
    return jnp.stack(hs), jnp.stack(cs)


if __name__ == "__main__":
    batch, input_size, hidden_size, num_layers = 2, 16, 32, 3

    key = jax.random.PRNGKey(0)
    keys = jax.random.split(key, 4 + 4 * num_layers)

    x = jax.random.normal(keys[0], (batch, input_size), jnp.float32)
    h0 = jax.random.normal(keys[1], (num_layers, batch, hidden_size), jnp.float32)
    c0 = jax.random.normal(keys[2], (num_layers, batch, hidden_size), jnp.float32)

    # Deterministic params, matching nn.LSTMCell init: U(-1/sqrt(H), 1/sqrt(H)).
    k = 1.0 / (hidden_size ** 0.5)
    w_ih_list, w_hh_list, b_ih_list, b_hh_list = [], [], [], []
    for l in range(num_layers):
        in_l = input_size if l == 0 else hidden_size
        kk = keys[4 + 4 * l: 8 + 4 * l]
        w_ih_list.append(jax.random.uniform(kk[0], (4 * hidden_size, in_l),
                                            jnp.float32, -k, k))
        w_hh_list.append(jax.random.uniform(kk[1], (4 * hidden_size, hidden_size),
                                            jnp.float32, -k, k))
        b_ih_list.append(jax.random.uniform(kk[2], (4 * hidden_size,),
                                            jnp.float32, -k, k))
        b_hh_list.append(jax.random.uniform(kk[3], (4 * hidden_size,),
                                            jnp.float32, -k, k))

    fwd = jax.jit(multilayer_lstm_cells)
    new_h, new_c = fwd(x, h0, c0, w_ih_list, w_hh_list, b_ih_list, b_hh_list)
    jax.block_until_ready((new_h, new_c))

    ref_h, ref_c = _reference(x, h0, c0, w_ih_list, w_hh_list,
                              b_ih_list, b_hh_list)
    # bf16 matmul inputs -> compare against the bf16-mirroring reference.
    assert jnp.allclose(new_h, ref_h, atol=2e-3, rtol=2e-3), "h mismatch"
    assert jnp.allclose(new_c, ref_c, atol=2e-3, rtol=2e-3), "c mismatch"

    print("KERNEL_OK")
</pallas_src>

<mosaic_0001>
module attributes {stable_mosaic.version = 11 : i64} {
  func.func @_lstm_serial_kernel(%arg0: i32, %arg1: memref<1x2x128xf32, #tpu.memory_space<vmem>>, %arg2: memref<1x32x128xbf16, #tpu.memory_space<vmem>>, %arg3: memref<1x2x32xf32, #tpu.memory_space<vmem>>, %arg4: memref<1x2x32xf32, #tpu.memory_space<vmem>>, %arg5: memref<1x2x32xf32, #tpu.memory_space<vmem>>, %arg6: memref<2x32xbf16, #tpu.memory_space<vmem>>) attributes {dimension_semantics = [#tpu.dimension_semantics<arbitrary>], iteration_bounds = array<i64: 3>, scalar_prefetch = 0 : i64, scratch_operands = 1 : i64, tpu.core_type = #tpu.core_type<tc>, window_params = [{transform_indices = @transform_0, window_bounds = array<i64: 1, 2, 128>}, {transform_indices = @transform_1, window_bounds = array<i64: 1, 32, 128>}, {transform_indices = @transform_2, window_bounds = array<i64: 1, 2, 32>}, {transform_indices = @transform_3, window_bounds = array<i64: 1, 2, 32>}, {transform_indices = @transform_4, window_bounds = array<i64: 1, 2, 32>}]} {
    %c0_i32 = arith.constant 0 : i32
    %0 = arith.cmpi eq, %arg0, %c0_i32 : i32
    %1 = arith.extui %0 : i1 to i32
    %c0_i32_0 = arith.constant 0 : i32
    %2 = arith.cmpi ne, %1, %c0_i32_0 : i32
    scf.if %2 {
      %c0 = arith.constant 0 : index
      %c0_3 = arith.constant 0 : index
      %c0_4 = arith.constant 0 : index
      %6 = vector.load %arg1[%c0, %c0_3, %c0_4] : memref<1x2x128xf32, #tpu.memory_space<vmem>>, vector<1x2x128xf32>
      %7 = vector.shape_cast %6 : vector<1x2x128xf32> to vector<2x128xf32>
      %c0_5 = arith.constant 0 : index
      %c0_6 = arith.constant 0 : index
      %c0_7 = arith.constant 0 : index
      %8 = vector.load %arg3[%c0_5, %c0_6, %c0_7] : memref<1x2x32xf32, #tpu.memory_space<vmem>>, vector<1x2x32xf32>
      %9 = vector.shape_cast %8 : vector<1x2x32xf32> to vector<2x32xf32>
      %10 = vector.extract_strided_slice %7 {offsets = [0, 0], sizes = [2, 32], strides = [1, 1]} : vector<2x128xf32> to vector<2x32xf32>
      %11 = arith.negf %10 : vector<2x32xf32>
      %12 = math.exp %11 : vector<2x32xf32>
      %cst = arith.constant 1.000000e+00 : f32
      %13 = vector.broadcast %cst : f32 to vector<2x32xf32>
      %14 = arith.addf %13, %12 : vector<2x32xf32>
      %15 = arith.divf %13, %14 : vector<2x32xf32>
      %16 = vector.extract_strided_slice %7 {offsets = [0, 32], sizes = [2, 32], strides = [1, 1]} : vector<2x128xf32> to vector<2x32xf32>
      %17 = arith.negf %16 : vector<2x32xf32>
      %18 = math.exp %17 : vector<2x32xf32>
      %cst_8 = arith.constant 1.000000e+00 : f32
      %19 = vector.broadcast %cst_8 : f32 to vector<2x32xf32>
      %20 = arith.addf %19, %18 : vector<2x32xf32>
      %21 = arith.divf %19, %20 : vector<2x32xf32>
      %22 = vector.extract_strided_slice %7 {offsets = [0, 64], sizes = [2, 32], strides = [1, 1]} : vector<2x128xf32> to vector<2x32xf32>
      %23 = math.tanh %22 : vector<2x32xf32>
      %24 = vector.extract_strided_slice %7 {offsets = [0, 96], sizes = [2, 32], strides = [1, 1]} : vector<2x128xf32> to vector<2x32xf32>
      %25 = arith.negf %24 : vector<2x32xf32>
      %26 = math.exp %25 : vector<2x32xf32>
      %cst_9 = arith.constant 1.000000e+00 : f32
      %27 = vector.broadcast %cst_9 : f32 to vector<2x32xf32>
      %28 = arith.addf %27, %26 : vector<2x32xf32>
      %29 = arith.divf %27, %28 : vector<2x32xf32>
      %30 = arith.mulf %21, %9 : vector<2x32xf32>
      %31 = arith.mulf %15, %23 : vector<2x32xf32>
      %32 = arith.addf %30, %31 : vector<2x32xf32>
      %33 = math.tanh %32 : vector<2x32xf32>
      %34 = arith.mulf %29, %33 : vector<2x32xf32>
      %c0_10 = arith.constant 0 : index
      %c0_11 = arith.constant 0 : index
      %c0_12 = arith.constant 0 : index
      %35 = vector.load %arg4[%c0_10, %c0_11, %c0_12] : memref<1x2x32xf32, #tpu.memory_space<vmem>>, vector<1x2x32xf32>
      %36 = vector.shape_cast %35 : vector<1x2x32xf32> to vector<2x32xf32>
      %37 = vector.shape_cast %34 : vector<2x32xf32> to vector<1x2x32xf32>
      tpu.vector_store %arg4[%c0_10, %c0_11, %c0_12], %37 {strides = array<i32>} : memref<1x2x32xf32, #tpu.memory_space<vmem>>, vector<1x2x32xf32>,
      %c0_13 = arith.constant 0 : index
      %c0_14 = arith.constant 0 : index
      %c0_15 = arith.constant 0 : index
      %38 = vector.load %arg5[%c0_13, %c0_14, %c0_15] : memref<1x2x32xf32, #tpu.memory_space<vmem>>, vector<1x2x32xf32>
      %39 = vector.shape_cast %38 : vector<1x2x32xf32> to vector<2x32xf32>
      %40 = vector.shape_cast %32 : vector<2x32xf32> to vector<1x2x32xf32>
      tpu.vector_store %arg5[%c0_13, %c0_14, %c0_15], %40 {strides = array<i32>} : memref<1x2x32xf32, #tpu.memory_space<vmem>>, vector<1x2x32xf32>,
      %41 = arith.truncf %34 : vector<2x32xf32> to vector<2x32xbf16>
      %c0_16 = arith.constant 0 : index
      %c0_17 = arith.constant 0 : index
      %42 = vector.load %arg6[%c0_16, %c0_17] : memref<2x32xbf16, #tpu.memory_space<vmem>>, vector<2x32xbf16>
      tpu.vector_store %arg6[%c0_16, %c0_17], %41 {strides = array<i32>} : memref<2x32xbf16, #tpu.memory_space<vmem>>, vector<2x32xbf16>,
    } else {
    }
    %c0_i32_1 = arith.constant 0 : i32
    %3 = arith.cmpi sgt, %arg0, %c0_i32_1 : i32
    %4 = arith.extui %3 : i1 to i32
    %c0_i32_2 = arith.constant 0 : i32
    %5 = arith.cmpi ne, %4, %c0_i32_2 : i32
    scf.if %5 {
      %c0 = arith.constant 0 : index
      %c0_3 = arith.constant 0 : index
      %c0_4 = arith.constant 0 : index
      %6 = vector.load %arg1[%c0, %c0_3, %c0_4] : memref<1x2x128xf32, #tpu.memory_space<vmem>>, vector<1x2x128xf32>
      %7 = vector.shape_cast %6 : vector<1x2x128xf32> to vector<2x128xf32>
      %c0_5 = arith.constant 0 : index
      %c0_6 = arith.constant 0 : index
      %8 = vector.load %arg6[%c0_5, %c0_6] : memref<2x32xbf16, #tpu.memory_space<vmem>>, vector<2x32xbf16>
      %c0_7 = arith.constant 0 : index
      %c0_8 = arith.constant 0 : index
      %c0_9 = arith.constant 0 : index
      %9 = vector.load %arg2[%c0_7, %c0_8, %c0_9] : memref<1x32x128xbf16, #tpu.memory_space<vmem>>, vector<1x32x128xbf16>
      %10 = vector.shape_cast %9 : vector<1x32x128xbf16> to vector<32x128xbf16>
      %cst = arith.constant dense<0.000000e+00> : vector<2x128xf32>
      %11 = tpu.matmul %8, %10, %cst {dimension_numbers = #tpu.dot_dimension_numbers<[1], [0], [0], [1], [0, 0, 1, 1], [], []>} : vector<2x32xbf16>, vector<32x128xbf16>, vector<2x128xf32> -> vector<2x128xf32>
      %12 = arith.addf %7, %11 : vector<2x128xf32>
      %c0_10 = arith.constant 0 : index
      %c0_11 = arith.constant 0 : index
      %c0_12 = arith.constant 0 : index
      %13 = vector.load %arg3[%c0_10, %c0_11, %c0_12] : memref<1x2x32xf32, #tpu.memory_space<vmem>>, vector<1x2x32xf32>
      %14 = vector.shape_cast %13 : vector<1x2x32xf32> to vector<2x32xf32>
      %15 = vector.extract_strided_slice %12 {offsets = [0, 0], sizes = [2, 32], strides = [1, 1]} : vector<2x128xf32> to vector<2x32xf32>
      %16 = arith.negf %15 : vector<2x32xf32>
      %17 = math.exp %16 : vector<2x32xf32>
      %cst_13 = arith.constant 1.000000e+00 : f32
      %18 = vector.broadcast %cst_13 : f32 to vector<2x32xf32>
      %19 = arith.addf %18, %17 : vector<2x32xf32>
      %20 = arith.divf %18, %19 : vector<2x32xf32>
      %21 = vector.extract_strided_slice %12 {offsets = [0, 32], sizes = [2, 32], strides = [1, 1]} : vector<2x128xf32> to vector<2x32xf32>
      %22 = arith.negf %21 : vector<2x32xf32>
      %23 = math.exp %22 : vector<2x32xf32>
      %cst_14 = arith.constant 1.000000e+00 : f32
      %24 = vector.broadcast %cst_14 : f32 to vector<2x32xf32>
      %25 = arith.addf %24, %23 : vector<2x32xf32>
      %26 = arith.divf %24, %25 : vector<2x32xf32>
      %27 = vector.extract_strided_slice %12 {offsets = [0, 64], sizes = [2, 32], strides = [1, 1]} : vector<2x128xf32> to vector<2x32xf32>
      %28 = math.tanh %27 : vector<2x32xf32>
      %29 = vector.extract_strided_slice %12 {offsets = [0, 96], sizes = [2, 32], strides = [1, 1]} : vector<2x128xf32> to vector<2x32xf32>
      %30 = arith.negf %29 : vector<2x32xf32>
      %31 = math.exp %30 : vector<2x32xf32>
      %cst_15 = arith.constant 1.000000e+00 : f32
      %32 = vector.broadcast %cst_15 : f32 to vector<2x32xf32>
      %33 = arith.addf %32, %31 : vector<2x32xf32>
      %34 = arith.divf %32, %33 : vector<2x32xf32>
      %35 = arith.mulf %26, %14 : vector<2x32xf32>
      %36 = arith.mulf %20, %28 : vector<2x32xf32>
      %37 = arith.addf %35, %36 : vector<2x32xf32>
      %38 = math.tanh %37 : vector<2x32xf32>
      %39 = arith.mulf %34, %38 : vector<2x32xf32>
      %c0_16 = arith.constant 0 : index
      %c0_17 = arith.constant 0 : index
      %c0_18 = arith.constant 0 : index
      %40 = vector.load %arg4[%c0_16, %c0_17, %c0_18] : memref<1x2x32xf32, #tpu.memory_space<vmem>>, vector<1x2x32xf32>
      %41 = vector.shape_cast %40 : vector<1x2x32xf32> to vector<2x32xf32>
      %42 = vector.shape_cast %39 : vector<2x32xf32> to vector<1x2x32xf32>
      tpu.vector_store %arg4[%c0_16, %c0_17, %c0_18], %42 {strides = array<i32>} : memref<1x2x32xf32, #tpu.memory_space<vmem>>, vector<1x2x32xf32>,
      %c0_19 = arith.constant 0 : index
      %c0_20 = arith.constant 0 : index
      %c0_21 = arith.constant 0 : index
      %43 = vector.load %arg5[%c0_19, %c0_20, %c0_21] : memref<1x2x32xf32, #tpu.memory_space<vmem>>, vector<1x2x32xf32>
      %44 = vector.shape_cast %43 : vector<1x2x32xf32> to vector<2x32xf32>
      %45 = vector.shape_cast %37 : vector<2x32xf32> to vector<1x2x32xf32>
      tpu.vector_store %arg5[%c0_19, %c0_20, %c0_21], %45 {strides = array<i32>} : memref<1x2x32xf32, #tpu.memory_space<vmem>>, vector<1x2x32xf32>,
      %46 = arith.truncf %39 : vector<2x32xf32> to vector<2x32xbf16>
      %c0_22 = arith.constant 0 : index
      %c0_23 = arith.constant 0 : index
      %47 = vector.load %arg6[%c0_22, %c0_23] : memref<2x32xbf16, #tpu.memory_space<vmem>>, vector<2x32xbf16>
      tpu.vector_store %arg6[%c0_22, %c0_23], %46 {strides = array<i32>} : memref<2x32xbf16, #tpu.memory_space<vmem>>, vector<2x32xbf16>,
    } else {
    }
    return
  }
  func.func @transform_0(%arg0: i32) -> (i32, i32, i32) {
    %c0_i32 = arith.constant 0 : i32
    %c0_i32_0 = arith.constant 0 : i32
    %c0_i32_1 = arith.constant 0 : i32
    return %arg0, %c0_i32, %c0_i32_0 : i32, i32, i32
  }
  func.func @transform_1(%arg0: i32) -> (i32, i32, i32) {
    %c1_i32 = arith.constant 1 : i32
    %0 = arith.subi %arg0, %c1_i32 : i32
    %c0_i32 = arith.constant 0 : i32
    %1 = arith.maxsi %0, %c0_i32 : i32
    %c0_i32_0 = arith.constant 0 : i32
    %c0_i32_1 = arith.constant 0 : i32
    %c0_i32_2 = arith.constant 0 : i32
    return %1, %c0_i32_0, %c0_i32_1 : i32, i32, i32
  }
  func.func @transform_2(%arg0: i32) -> (i32, i32, i32) {
    %c0_i32 = arith.constant 0 : i32
    %c0_i32_0 = arith.constant 0 : i32
    %c0_i32_1 = arith.constant 0 : i32
    return %arg0, %c0_i32, %c0_i32_0 : i32, i32, i32
  }
  func.func @transform_3(%arg0: i32) -> (i32, i32, i32) {
    %c0_i32 = arith.constant 0 : i32
    %c0_i32_0 = arith.constant 0 : i32
    %c0_i32_1 = arith.constant 0 : i32
    return %arg0, %c0_i32, %c0_i32_0 : i32, i32, i32
  }
  func.func @transform_4(%arg0: i32) -> (i32, i32, i32) {
    %c0_i32 = arith.constant 0 : i32
    %c0_i32_0 = arith.constant 0 : i32
    %c0_i32_1 = arith.constant 0 : i32
    return %arg0, %c0_i32, %c0_i32_0 : i32, i32, i32
  }
}

</mosaic_0001>

<llo_original>
// kernel: multilayer_lstm_cells.1
$region0: #{multilayer_lstm_cells.1}
  #allocation0 [shape = 'u32[]', space=smem, size = 0x4, offset = 0x4, fixed_abs, tag = 'smem constant byte address 0x4 - core index']
  #allocation1 [shape = 'u32[144,128]{1,0:T(1,128)}', space=vmem, size = 0x12000, scoped, tag = 'internal scratch']
  #allocation2 [shape = 'bf16[2,32]{1,0:T(2,128)(2,1)}', space=vmem, size = 0x200, scoped, tag = 'scratch operand']
  %s0 = inlined_call_operand.vmem [shape: f32[3,2,128], index: 0, kind: input, shape index: {}]
  %s1 = inlined_call_operand.vmem [shape: bf16[2,32,128], index: 1, kind: input, shape index: {}]
  %s2 = inlined_call_operand.vmem [shape: f32[3,2,32], index: 2, kind: input, shape index: {}]
  %s3 = inlined_call_operand.hbm [shape: f32[3,2,32], index: 3, kind: output, shape index: {0}]
  %s4 = inlined_call_operand.hbm [shape: f32[3,2,32], index: 4, kind: output, shape index: {1}]
  %5 = xla_tuple %s3, %s4
  %s6 = sld [smem:[#allocation0]]
  $region61: #{multilayer_lstm_cells.1} parent=0
    _
  %s8 = ssub.s32 1, %s6
  %s9 = scalar_select 0, %s8, %s6
  $region1: #{multilayer_lstm_cells.1} parent=0
    #allocation3 [shape = 'u8[2048]{0}', space=vmem, size = 0x800, scoped, tag = 'output window, operand 0']
    #allocation4 [shape = 's32[2]{0}', space=sflag, size = 0x8, scoped, tag = 'scoped memory for multilayer_lstm_cells.1']
    #allocation5 [shape = 'u8[2048]{0}', space=vmem, size = 0x800, scoped, tag = 'output window, operand 1']
    #allocation6 [shape = 's32[2]{0}', space=sflag, size = 0x8, scoped, tag = 'scoped memory for multilayer_lstm_cells.1']
    %10 = vsyncpa [#allocation4], 0
    %s11 = scalar_lea.sflag [#allocation4], 1
    %12 = vsyncpa %s11, 0
    %13 = vsyncpa [#allocation6], 0
    %s14 = scalar_lea.sflag [#allocation6], 1
    %15 = vsyncpa %s14, 0
    loop: start=0, step=1, limit=5
    $region2: #{multilayer_lstm_cells.1} parent=1 // loop_pre_header
      _
    $region3: #{multilayer_lstm_cells.1} parent=1 // loop_header
      %s17 = sphi 0, %s21
      %p18 = scmp.ge.s32.totalorder %s17, 5
      %s27 = sphi 0, %s29
      %s30 = sphi 0, %s27
      %s31 = sphi 0, %s30
      %s47 = sphi 0, %s31
      %s59 = sphi 0, %s61
      %s62 = sphi 0, %s59
      %s63 = sphi 0, %s62
      %s79 = sphi 0, %s63
      %s85 = sphi 0, %s87
      %s88 = sphi 0, %s85
      %s89 = sphi 0, %s88
      %s105 = sphi 0, %s89
      %s111 = sphi 0, %s113
      %s114 = sphi 0, %s111
      %s115 = sphi 0, %s114
      %s131 = sphi 0, %s115
      %s137 = sphi 0, %s139
      %s140 = sphi 0, %s137
      %s141 = sphi 0, %s140
      %s157 = sphi 0, %s141
    $region4: #{multilayer_lstm_cells.1} parent=1 // loop_header_branch
      %20 = sbr.rel (%p18) target = $region8
    $region5: #{multilayer_lstm_cells.1} parent=1 // loop_body
      %s22 = ssub.s32 %s17, 1
      %s23 = ssub.s32 %s17, 2
      %s24 = sadd.s32 %s17, 1
      %s25 = ssub.s32 %s17, %s24
      %p26 = scmp.eq.s32.totalorder %s25, 0
      %s28 = sadd.s32 %s27, 1
      %s29 = scalar_select %p26, %s27, %s28
      %p32 = pneg %p26
      %p33 = scmp.eq.s32.totalorder %s17, 2
      %p34 = por %p32, %p33
      %p35 = scmp.ne.s32.totalorder %s27, %s30
      %p36 = scmp.eq.s32.totalorder %s17, 0
      %p37 = por %p35, %p36
      %p38 = scmp.ne.s32.totalorder %s27, %s30
      %p39 = scmp.eq.s32.totalorder %s22, 2
      %p40 = por %p38, %p39
      %p41 = scmp.ne.s32.totalorder %s30, %s31
      %p42 = scmp.eq.s32.totalorder %s22, 0
      %p43 = por %p41, %p42
      %p44 = scmp.ne.s32.totalorder %s30, %s31
      %p45 = scmp.eq.s32.totalorder %s23, 2
      %p46 = por %p44, %p45
      %p48 = scmp.ne.s32.totalorder %s31, %s47
      %p49 = scmp.eq.s32.totalorder %s23, 0
      %p50 = por %p48, %p49
      %s51 = ssub.s32 %s17, 1
      %p52 = scmp.gt.s32.totalorder %s51, 0
      %s53 = scalar_select %p52, %s51, 0
      %s54 = ssub.s32 %s24, 1
      %p55 = scmp.gt.s32.totalorder %s54, 0
      %s56 = scalar_select %p55, %s54, 0
      %s57 = ssub.s32 %s53, %s56
      %p58 = scmp.eq.s32.totalorder %s57, 0
      %s60 = sadd.s32 %s59, 1
      %s61 = scalar_select %p58, %s59, %s60
      %p64 = pneg %p58
      %p65 = scmp.eq.s32.totalorder %s17, 2
      %p66 = por %p64, %p65
      %p67 = scmp.ne.s32.totalorder %s59, %s62
      %p68 = scmp.eq.s32.totalorder %s17, 0
      %p69 = por %p67, %p68
      %p70 = scmp.ne.s32.totalorder %s59, %s62
      %p71 = scmp.eq.s32.totalorder %s22, 2
      %p72 = por %p70, %p71
      %p73 = scmp.ne.s32.totalorder %s62, %s63
      %p74 = scmp.eq.s32.totalorder %s22, 0
      %p75 = por %p73, %p74
      %p76 = scmp.ne.s32.totalorder %s62, %s63
      %p77 = scmp.eq.s32.totalorder %s23, 2
      %p78 = por %p76, %p77
      %p80 = scmp.ne.s32.totalorder %s63, %s79
      %p81 = scmp.eq.s32.totalorder %s23, 0
      %p82 = por %p80, %p81
      %s83 = ssub.s32 %s17, %s24
      %p84 = scmp.eq.s32.totalorder %s83, 0
      %s86 = sadd.s32 %s85, 1
      %s87 = scalar_select %p84, %s85, %s86
      %p90 = pneg %p84
      %p91 = scmp.eq.s32.totalorder %s17, 2
      %p92 = por %p90, %p91
      %p93 = scmp.ne.s32.totalorder %s85, %s88
      %p94 = scmp.eq.s32.totalorder %s17, 0
      %p95 = por %p93, %p94
      %p96 = scmp.ne.s32.totalorder %s85, %s88
      %p97 = scmp.eq.s32.totalorder %s22, 2
      %p98 = por %p96, %p97
      %p99 = scmp.ne.s32.totalorder %s88, %s89
      %p100 = scmp.eq.s32.totalorder %s22, 0
      %p101 = por %p99, %p100
      %p102 = scmp.ne.s32.totalorder %s88, %s89
      %p103 = scmp.eq.s32.totalorder %s23, 2
      %p104 = por %p102, %p103
      %p106 = scmp.ne.s32.totalorder %s89, %s105
      %p107 = scmp.eq.s32.totalorder %s23, 0
      %p108 = por %p106, %p107
      %s109 = ssub.s32 %s17, %s24
      %p110 = scmp.eq.s32.totalorder %s109, 0
      %s112 = sadd.s32 %s111, 1
      %s113 = scalar_select %p110, %s111, %s112
      %p116 = pneg %p110
      %p117 = scmp.eq.s32.totalorder %s17, 2
      %p118 = por %p116, %p117
      %p119 = scmp.ne.s32.totalorder %s111, %s114
      %p120 = scmp.eq.s32.totalorder %s17, 0
      %p121 = por %p119, %p120
      %p122 = scmp.ne.s32.totalorder %s111, %s114
      %p123 = scmp.eq.s32.totalorder %s22, 2
      %p124 = por %p122, %p123
      %p125 = scmp.ne.s32.totalorder %s114, %s115
      %p126 = scmp.eq.s32.totalorder %s22, 0
      %p127 = por %p125, %p126
      %p128 = scmp.ne.s32.totalorder %s114, %s115
      %p129 = scmp.eq.s32.totalorder %s23, 2
      %p130 = por %p128, %p129
      %p132 = scmp.ne.s32.totalorder %s115, %s131
      %p133 = scmp.eq.s32.totalorder %s23, 0
      %p134 = por %p132, %p133
      %s135 = ssub.s32 %s17, %s24
      %p136 = scmp.eq.s32.totalorder %s135, 0
      %s138 = sadd.s32 %s137, 1
      %s139 = scalar_select %p136, %s137, %s138
      %p142 = pneg %p136
      %p143 = scmp.eq.s32.totalorder %s17, 2
      %p144 = por %p142, %p143
      %p145 = scmp.ne.s32.totalorder %s137, %s140
      %p146 = scmp.eq.s32.totalorder %s17, 0
      %p147 = por %p145, %p146
      %p148 = scmp.ne.s32.totalorder %s137, %s140
      %p149 = scmp.eq.s32.totalorder %s22, 2
      %p150 = por %p148, %p149
      %p151 = scmp.ne.s32.totalorder %s140, %s141
      %p152 = scmp.eq.s32.totalorder %s22, 0
      %p153 = por %p151, %p152
      %p154 = scmp.ne.s32.totalorder %s140, %s141
      %p155 = scmp.eq.s32.totalorder %s23, 2
      %p156 = por %p154, %p155
      %p158 = scmp.ne.s32.totalorder %s141, %s157
      %p159 = scmp.eq.s32.totalorder %s23, 0
      %p160 = por %p158, %p159
      %p161 = scmp.le.s32.totalorder 1, %s17
      %p162 = scmp.lt.s32.totalorder %s17, 4
      %p163 = pnand %p161, %p162
      %p164 = pneg %p163
      // Predicated region
      $region9: #{multilayer_lstm_cells.1} parent=5 // pred_check
        _
      $region10: #{multilayer_lstm_cells.1} parent=5 // pred_check_branch
        %166 = sbr.rel (%p163) target = $region12
      $region11: #{multilayer_lstm_cells.1} parent=5 // pred_region
        %s167 = ssub.s32 %s17, 1
      $region12: #{multilayer_lstm_cells.1} parent=5 // pred_fallthru
        _
      %p168 = scmp.lt.s32.totalorder %s17, 3
      // Predicated region
      $region13: #{multilayer_lstm_cells.1} parent=5 // pred_check
        %p169 = pneg %p168
      $region14: #{multilayer_lstm_cells.1} parent=5 // pred_check_branch
        %171 = sbr.rel (%p169) target = $region16
      $region15: #{multilayer_lstm_cells.1} parent=5 // pred_region
        // Predicated region
        $region17: #{multilayer_lstm_cells.1} parent=15 // pred_check
          %p172 = pneg %p37
        $region18: #{multilayer_lstm_cells.1} parent=15 // pred_check_branch
          %174 = sbr.rel (%p172) target = $region20
        $region19: #{multilayer_lstm_cells.1} parent=15 // pred_region
          %p175 = scmp.lt.s32.totalorder %s17, 2
          %s176 = scalar_select %p175, %s17, 2
          %s177 = smul.addr %s176, 2
          %s178 = scalar_lea.vmem %s0, %s177
        $region20: #{multilayer_lstm_cells.1} parent=15 // pred_fallthru
          _
        // Predicated region
        $region21: #{multilayer_lstm_cells.1} parent=15 // pred_check
          %p179 = pneg %p69
        $region22: #{multilayer_lstm_cells.1} parent=15 // pred_check_branch
          %181 = sbr.rel (%p179) target = $region24
        $region23: #{multilayer_lstm_cells.1} parent=15 // pred_region
          %s182 = ssub.s32 %s17, 1
          %p183 = scmp.gt.s32.totalorder %s182, 0
          %s184 = scalar_select %p183, %s182, 0
          %p185 = scmp.lt.s32.totalorder %s184, 1
          %s186 = scalar_select %p185, %s184, 1
          %s187 = smul.addr %s186, 4
          %s188 = smul.addr %s187, 4
          %s189 = scalar_lea.vmem %s1, %s188
          %s190 = ssub.s32 %s17, 1
          %p191 = scmp.gt.s32.totalorder %s190, 0
          %s192 = scalar_select %p191, %s190, 0
        $region24: #{multilayer_lstm_cells.1} parent=15 // pred_fallthru
          _
        // Predicated region
        $region25: #{multilayer_lstm_cells.1} parent=15 // pred_check
          %p193 = pneg %p95
        $region26: #{multilayer_lstm_cells.1} parent=15 // pred_check_branch
          %195 = sbr.rel (%p193) target = $region28
        $region27: #{multilayer_lstm_cells.1} parent=15 // pred_region
          %p196 = scmp.lt.s32.totalorder %s17, 2
          %s197 = scalar_select %p196, %s17, 2
          %s198 = smul.addr %s197, 2
          %s199 = scalar_lea.vmem %s2, %s198
        $region28: #{multilayer_lstm_cells.1} parent=15 // pred_fallthru
          _
      $region16: #{multilayer_lstm_cells.1} parent=5 // pred_fallthru
        _
      %p200 = scmp.le.s32.totalorder 1, %s17
      %p201 = scmp.lt.s32.totalorder %s17, 4
      %p202 = pnand %p200, %p201
      %p203 = pneg %p202
      // Predicated region
      $region29: #{multilayer_lstm_cells.1} parent=5 // pred_check
        _
      $region30: #{multilayer_lstm_cells.1} parent=5 // pred_check_branch
        %205 = sbr.rel (%p202) target = $region32
      $region31: #{multilayer_lstm_cells.1} parent=5 // pred_region
        %s206 = ssub.s32 %s17, 1
        %p207 = scmp.lt.s32.totalorder %s22, 2
        %s208 = scalar_select %p207, %s22, 2
        %s209 = smul.addr %s208, 2
        %s210 = scalar_lea.vmem %s0, %s209
        %p211 = pneg %p43
        %p212 = pneg %p40
        %s213 = ssub.s32 %s22, 1
        %p214 = scmp.gt.s32.totalorder %s213, 0
        %s215 = scalar_select %p214, %s213, 0
        %p216 = scmp.lt.s32.totalorder %s215, 1
        %s217 = scalar_select %p216, %s215, 1
        %s218 = smul.addr %s217, 4
        %s219 = smul.addr %s218, 4
        %s220 = scalar_lea.vmem %s1, %s219
        %p221 = pneg %p75
        %p222 = pneg %p72
        %p223 = scmp.lt.s32.totalorder %s22, 2
        %s224 = scalar_select %p223, %s22, 2
        %s225 = smul.addr %s224, 2
        %s226 = scalar_lea.vmem %s2, %s225
        %p227 = pneg %p101
        %p228 = pneg %p98
        %p229 = pneg %p127
        %p230 = pneg %p124
        %s231 = sand.u32 %s114, 1
        %s232 = scalar_lea.sflag [#allocation4], %s231
        %s233 = sand.u32 %s114, 1
        %s234 = smul.addr %s233, 2
        %s235 = scalar_lea.vmem [#allocation3], %s234
        %p236 = pneg %p153
        %p237 = pneg %p150
        %s238 = sand.u32 %s140, 1
        %s239 = scalar_lea.sflag [#allocation6], %s238
        %s240 = sand.u32 %s140, 1
        %s241 = smul.addr %s240, 2
        %s242 = scalar_lea.vmem [#allocation5], %s241
        %p243 = scmp.lt.s32.totalorder %s22, 2
        %s244 = scalar_select %p243, %s22, 2
        %s245 = smul.addr %s244, 2
        %s246 = scalar_lea.vmem %s0, %s245
        %s247 = ssub.s32 %s22, 1
        %p248 = scmp.gt.s32.totalorder %s247, 0
        %s249 = scalar_select %p248, %s247, 0
        %p250 = scmp.lt.s32.totalorder %s249, 1
        %s251 = scalar_select %p250, %s249, 1
        %s252 = smul.addr %s251, 4
        %s253 = smul.addr %s252, 4
        %s254 = scalar_lea.vmem %s1, %s253
        %s255 = ssub.s32 %s22, 1
        %p256 = scmp.gt.s32.totalorder %s255, 0
        %s257 = scalar_select %p256, %s255, 0
        %p258 = scmp.lt.s32.totalorder %s22, 2
        %s259 = scalar_select %p258, %s22, 2
        %s260 = smul.addr %s259, 2
        %s261 = scalar_lea.vmem %s2, %s260
        %p263 = scmp.eq.s32.totalorder %s22, 0
        // Predicated region
        $region33: #{multilayer_lstm_cells.1} parent=31 // pred_check
          %p264 = pneg %p263
        $region34: #{multilayer_lstm_cells.1} parent=31 // pred_check_branch
          %266 = sbr.rel (%p264) target = $region36
        $region35: #{multilayer_lstm_cells.1} parent=31 // pred_region
          %v267 = vld [vmem:[%s246] sm:$0x3]
          %v268 = vld [vmem:[%s261] sm:$0x3]
          %v269 = vxor.u32 %v267, 2147483648
          %v270 = vmul.f32 %v269, 1.442695
          %v271 = vpow.pop %v270
          %v272 = vadd.f32 %v271, 1.0
          %v273 = vrcp.pop %v272
          %v274 = vmul.f32 1.0, %v273
          %v275 = vtanh.pop %v267
          %277 = vrot.lane.b32.xlu0 %v268, 32
          %v278 = vpop.permute.xlu0 %277
          %v280 = vmul.f32 %v274, %v278
          %282 = vrot.lane.b32.xlu0 %v275, 64
          %v283 = vpop.permute.xlu0 %282
          %v285 = vmul.f32 %v274, %v283
          %287 = vrot.lane.b32.xlu0 %v285, 32
          %v288 = vpop.permute.xlu0 %287
          %v290 = vadd.f32 %v280, %v288
          %v291 = vtanh.pop %v290
          %293 = vrot.lane.b32.xlu0 %v291, 64
          %v294 = vpop.permute.xlu0 %293
          %v296 = vmul.f32 %v274, %v294
          %298 = vrot.lane.b32.xlu0 %v296, 32
          %v299 = vpop.permute.xlu0 %298
          %vm301 = vcmask 254976
          %302 = vst.msk [vmem:[%s235] sm:$0x3] %vm301, %v299
          %304 = vrot.lane.b32.xlu0 %v290, 96
          %v305 = vpop.permute.xlu0 %304
          %307 = vst.msk [vmem:[%s242] sm:$0x3] %vm301, %v305
          %v308 = vpack.c.bf16 %v296, %v296
          %v311 = vunpack.c.l.s4 1966171168
          %v312 = vunpack.c.0.s8 %v311
          %v313 = vlaneseq
          %v314 = vshrl.u32 %v313, 7
          %v315 = vsub.s32 %v312, %v314
          %v316 = vrot.slane %v308, %v315
          %v318 = vunpack.c.l.s4 1966171168
          %v319 = vunpack.c.0.s8 %v318
          %v320 = vlaneseq
          %v321 = vshrl.u32 %v320, 7
          %v322 = vsub.s32 %v319, %v321
          %v323 = vrot.slane %v316, %v322
          %324 = vrot.lane.b32.xlu0 %v323, 32
          %v325 = vpop.permute.xlu0 %324
          %vm327 = vcmask 253952
          %328 = vst.msk [vmem:[#allocation2] sm:$0x1] %vm327, %v325
        $region36: #{multilayer_lstm_cells.1} parent=31 // pred_fallthru
          _
        %p329 = scmp.gt.s32.totalorder %s22, 0
        // Predicated region
        $region37: #{multilayer_lstm_cells.1} parent=31 // pred_check
          %p330 = pneg %p329
        $region38: #{multilayer_lstm_cells.1} parent=31 // pred_check_branch
          %332 = sbr.rel (%p330) target = $region40
        $region39: #{multilayer_lstm_cells.1} parent=31 // pred_region
          %v333 = vld [vmem:[%s246] sm:$0x3]
          %v334 = vld [vmem:[#allocation2] sm:$0x1]
          %v335 = vld [vmem:[%s254] sm:$0xf]
          %v336 = vld [vmem:[%s254 + $0x4] sm:$0xf]
          %v337 = vld [vmem:[%s254 + $0x8] sm:$0xf]
          %v338 = vld [vmem:[%s254 + $0xc] sm:$0xf]
          %v343 = vunpack.c.l.b16 %v335
          %v344 = vunpack.c.l.b16 %v336
          %v345 = vunpack.c.l.b16 %v337
          %v346 = vunpack.c.l.b16 %v338
          %v347 = vpack.c.b16 %v344, %v343
          %v348 = vpack.c.b16 %v346, %v345
          %vm351 = vcmask 261120
          %v353 = vsel %vm351, %v334, 0
          %355 = vmatprep.subr.bf16.mxu0 0
          %356 = vmatpush1.bf16.msra.mxu0 %v347
          %357 = vmatprep.subr.bf16.mxu0 0
          %358 = vmatpush1.bf16.msra.mxu0 %v348
          %359 = vmatprep.subr.bf16.mxu0 0
          %360 = vmatpush1.bf16.msra.mxu0 0
          %361 = vmatprep.subr.bf16.mxu0 0
          %362 = vmatpush1.bf16.msra.mxu0 0
          %363 = vmatprep.subr.bf16.mxu0 0
          %364 = vmatpush1.bf16.msra.mxu0 0
          %365 = vmatprep.subr.bf16.mxu0 0
          %366 = vmatpush1.bf16.msra.mxu0 0
          %367 = vmatprep.subr.bf16.mxu0 0
          %368 = vmatpush1.bf16.msra.mxu0 0
          %369 = vmatprep.subr.bf16.mxu0 0
          %370 = vmatpush1.bf16.msra.mxu0 0
          %371 = vmatprep.subr.bf16.mxu0 0
          %372 = vmatpush1.bf16.msra.mxu0 0
          %373 = vmatprep.subr.bf16.mxu0 0
          %374 = vmatpush1.bf16.msra.mxu0 0
          %375 = vmatprep.subr.bf16.mxu0 0
          %376 = vmatpush1.bf16.msra.mxu0 0
          %377 = vmatprep.subr.bf16.mxu0 0
          %378 = vmatpush1.bf16.msra.mxu0 0
          %379 = vmatprep.subr.bf16.mxu0 0
          %380 = vmatpush1.bf16.msra.mxu0 0
          %381 = vmatprep.subr.bf16.mxu0 0
          %382 = vmatpush1.bf16.msra.mxu0 0
          %383 = vmatprep.subr.bf16.mxu0 0
          %384 = vmatpush1.bf16.msra.mxu0 0
          %385 = vmatprep.subr.bf16.mxu0 0
          %386 = vmatpush1.bf16.msra.mxu0 0
          %387 = vmatprep.mubr.bf16.mxu0 0
          %388 = vmatmul.mubr.bf16.gmra.mrb[0].mxu0 %v353
          %v389 = vpop.f32.mrb[0].mxu0
          %v390 = vadd.f32 0.0, %v389
          %v391 = vpop.f32.mrb[0].mxu0
          %v392 = vpop.f32.mrb[0].mxu0
          %v393 = vpop.f32.mrb[0].mxu0
          %394 = vdwg.mxu0
          %v395 = vadd.f32 %v333, %v390
          %v396 = vld [vmem:[%s261] sm:$0x3]
          %v397 = vxor.u32 %v395, 2147483648
          %v398 = vmul.f32 %v397, 1.442695
          %v399 = vpow.pop %v398
          %v400 = vadd.f32 %v399, 1.0
          %v401 = vrcp.pop %v400
          %v402 = vmul.f32 1.0, %v401
          %v403 = vtanh.pop %v395
          %405 = vrot.lane.b32.xlu0 %v396, 32
          %v406 = vpop.permute.xlu0 %405
          %v408 = vmul.f32 %v402, %v406
          %410 = vrot.lane.b32.xlu0 %v403, 64
          %v411 = vpop.permute.xlu0 %410
          %v413 = vmul.f32 %v402, %v411
          %415 = vrot.lane.b32.xlu0 %v413, 32
          %v416 = vpop.permute.xlu0 %415
          %v418 = vadd.f32 %v408, %v416
          %v419 = vtanh.pop %v418
          %421 = vrot.lane.b32.xlu0 %v419, 64
          %v422 = vpop.permute.xlu0 %421
          %v424 = vmul.f32 %v402, %v422
          %426 = vrot.lane.b32.xlu0 %v424, 32
          %v427 = vpop.permute.xlu0 %426
          %vm429 = vcmask 254976
          %430 = vst.msk [vmem:[%s235] sm:$0x3] %vm429, %v427
          %432 = vrot.lane.b32.xlu0 %v418, 96
          %v433 = vpop.permute.xlu0 %432
          %435 = vst.msk [vmem:[%s242] sm:$0x3] %vm429, %v433
          %v436 = vpack.c.bf16 %v424, %v424
          %v439 = vunpack.c.l.s4 1966171168
          %v440 = vunpack.c.0.s8 %v439
          %v441 = vlaneseq
          %v442 = vshrl.u32 %v441, 7
          %v443 = vsub.s32 %v440, %v442
          %v444 = vrot.slane %v436, %v443
          %v446 = vunpack.c.l.s4 1966171168
          %v447 = vunpack.c.0.s8 %v446
          %v448 = vlaneseq
          %v449 = vshrl.u32 %v448, 7
          %v450 = vsub.s32 %v447, %v449
          %v451 = vrot.slane %v444, %v450
          %452 = vrot.lane.b32.xlu0 %v451, 32
          %v453 = vpop.permute.xlu0 %452
          %vm455 = vcmask 253952
          %456 = vst.msk [vmem:[#allocation2] sm:$0x1] %vm455, %v453
        $region40: #{multilayer_lstm_cells.1} parent=31 // pred_fallthru
          _
        %s457 = sand.u32 %s114, 1
        %s458 = scalar_lea.sflag [#allocation4], %s457
        %s459 = sand.u32 %s114, 1
        %s460 = smul.addr %s459, 2
        %s461 = scalar_lea.vmem [#allocation3], %s460
        %s462 = sand.u32 %s140, 1
        %s463 = scalar_lea.sflag [#allocation6], %s462
        %s464 = sand.u32 %s140, 1
        %s465 = smul.addr %s464, 2
        %s466 = scalar_lea.vmem [#allocation5], %s465
        // Predicated region
        $region41: #{multilayer_lstm_cells.1} parent=31 // pred_check
          %p467 = pneg %p124
        $region42: #{multilayer_lstm_cells.1} parent=31 // pred_check_branch
          %469 = sbr.rel (%p467) target = $region44
        $region43: #{multilayer_lstm_cells.1} parent=31 // pred_region
          %s471 = ssub.s32 32, 32
          %472 = vsyncadd %s458, %s471
          %s473 = smul.addr %s22, 32
          %s474 = scalar_lea.hbm %s3, %s473
          %s476 = sshll.u32 %s461, 4
          %s477 = int_to_ptr.vmem [resolvable:$true] %s476
          %479 = dma.vmem_to_hbm [thread:$0]  %s477, 32, %s474, %s458
        $region44: #{multilayer_lstm_cells.1} parent=31 // pred_fallthru
          _
        // Predicated region
        $region45: #{multilayer_lstm_cells.1} parent=31 // pred_check
          %p480 = pneg %p150
        $region46: #{multilayer_lstm_cells.1} parent=31 // pred_check_branch
          %482 = sbr.rel (%p480) target = $region48
        $region47: #{multilayer_lstm_cells.1} parent=31 // pred_region
          %s484 = ssub.s32 32, 32
          %485 = vsyncadd %s463, %s484
          %s486 = smul.addr %s22, 32
          %s487 = scalar_lea.hbm %s4, %s486
          %s489 = sshll.u32 %s466, 4
          %s490 = int_to_ptr.vmem [resolvable:$true] %s489
          %492 = dma.vmem_to_hbm [thread:$0]  %s490, 32, %s487, %s463
        $region48: #{multilayer_lstm_cells.1} parent=31 // pred_fallthru
          _
      $region32: #{multilayer_lstm_cells.1} parent=5 // pred_fallthru
        _
      %p493 = scmp.le.s32.totalorder 2, %s17
      // Predicated region
      $region49: #{multilayer_lstm_cells.1} parent=5 // pred_check
        %p494 = pneg %p493
      $region50: #{multilayer_lstm_cells.1} parent=5 // pred_check_branch
        %496 = sbr.rel (%p494) target = $region52
      $region51: #{multilayer_lstm_cells.1} parent=5 // pred_region
        %s497 = ssub.s32 %s17, 2
        // Predicated region
        $region53: #{multilayer_lstm_cells.1} parent=51 // pred_check
          %p498 = pneg %p130
        $region54: #{multilayer_lstm_cells.1} parent=51 // pred_check_branch
          %500 = sbr.rel (%p498) target = $region56
        $region55: #{multilayer_lstm_cells.1} parent=51 // pred_region
          %s501 = sand.u32 %s115, 1
          %s502 = scalar_lea.sflag [#allocation4], %s501
          %s503 = sand.u32 %s115, 1
          %s504 = smul.addr %s503, 2
          %s505 = scalar_lea.vmem [#allocation3], %s504
          %506 = dma.done %s502, 32
        $region56: #{multilayer_lstm_cells.1} parent=51 // pred_fallthru
          _
        // Predicated region
        $region57: #{multilayer_lstm_cells.1} parent=51 // pred_check
          %p507 = pneg %p156
        $region58: #{multilayer_lstm_cells.1} parent=51 // pred_check_branch
          %509 = sbr.rel (%p507) target = $region60
        $region59: #{multilayer_lstm_cells.1} parent=51 // pred_region
          %s510 = sand.u32 %s141, 1
          %s511 = scalar_lea.sflag [#allocation6], %s510
          %s512 = sand.u32 %s141, 1
          %s513 = smul.addr %s512, 2
          %s514 = scalar_lea.vmem [#allocation5], %s513
          %515 = dma.done %s511, 32
        $region60: #{multilayer_lstm_cells.1} parent=51 // pred_fallthru
          _
      $region52: #{multilayer_lstm_cells.1} parent=5 // pred_fallthru
        _
    $region6: #{multilayer_lstm_cells.1} parent=1 // loop_footer
      %s21 = sadd.s32 1, %s17
    $region7: #{multilayer_lstm_cells.1} parent=1 // loop_footer_branch
      %16 = sbr.rel target = $region3
    $region8: #{multilayer_lstm_cells.1} parent=1 // loop_exit
      _
    %516 = vsyncpa [#allocation4], 1
    %s517 = scalar_lea.sflag [#allocation4], 1
    %518 = vsyncpa %s517, 1
    %519 = vsyncpa [#allocation6], 1
    %s520 = scalar_lea.sflag [#allocation6], 1
    %521 = vsyncpa %s520, 1

</llo_original>
